<compile_context>
chip_gen: v7x
topology: tpu7x:2x2x1
jax: 0.10.0
libtpu: 0.0.40
codegen_flags: <defaults>
</compile_context>

<pallas_src>
import jax
import jax.numpy as jnp
from jax import lax
from jax.experimental import pallas as pl
from jax.experimental.pallas import tpu as pltpu

EPS = 1e-5  # torch.nn.LayerNorm default


def _round_up(x, m):
    return ((x + m - 1) // m) * m


def _cnn_layernorm_kernel(x_ref, g_ref, b_ref, o_ref):
    # x_ref / o_ref: (bc_tile, F, t_tile); g_ref / b_ref: (1, F, 1)
    x = x_ref[...].astype(jnp.float32)
    mean = jnp.mean(x, axis=1, keepdims=True)                    # reduce over F (sublanes, XLU)
    centered = x - mean
    var = jnp.mean(centered * centered, axis=1, keepdims=True)   # biased var, like torch
    inv = lax.rsqrt(var + EPS)
    g = g_ref[...].astype(jnp.float32)
    b = b_ref[...].astype(jnp.float32)
    o_ref[...] = (centered * inv * g + b).astype(o_ref.dtype)


def cnn_layer_norm(x, gamma, beta, *, bc_tile=8, t_tile_max=512):
    """CNNLayerNorm forward. x: (B, C, F, T); gamma, beta: (F,). Returns (B, C, F, T)."""
    B, C, F, T = x.shape
    BC = B * C
    x3 = x.reshape(BC, F, T)  # free reshape: same row-major layout, F stays sublane, T stays lane

    # Lane-dense time tile (multiple of 128); pad ragged dims instead of asserting.
    t_tile = min(t_tile_max, _round_up(T, 128))
    T_pad = _round_up(T, t_tile)
    bc_tile = min(bc_tile, BC)
    BC_pad = _round_up(BC, bc_tile)

    if (T_pad != T) or (BC_pad != BC):
        x3 = jnp.pad(x3, ((0, BC_pad - BC), (0, 0), (0, T_pad - T)))

    g3 = gamma.reshape(1, F, 1)
    b3 = beta.reshape(1, F, 1)

    grid = (BC_pad // bc_tile, T_pad // t_tile)

    out = pl.pallas_call(
        _cnn_layernorm_kernel,
        out_shape=jax.ShapeDtypeStruct((BC_pad, F, T_pad), x.dtype),
        grid_spec=pltpu.PrefetchScalarGridSpec(
            num_scalar_prefetch=0,
            grid=grid,
            in_specs=[
                pl.BlockSpec((bc_tile, F, t_tile), lambda i, j: (i, 0, j)),
                pl.BlockSpec((1, F, 1), lambda i, j: (0, 0, 0)),
                pl.BlockSpec((1, F, 1), lambda i, j: (0, 0, 0)),
            ],
            out_specs=pl.BlockSpec((bc_tile, F, t_tile), lambda i, j: (i, 0, j)),
        ),
        compiler_params=pltpu.CompilerParams(
            dimension_semantics=("parallel", "parallel"),
            vmem_limit_bytes=32 * 1024 * 1024,  # fits blocks on v5e(16MiB dflt)/v6e/v7x(64MiB phys)
        ),
    )(x3, g3, b3)

    if (T_pad != T) or (BC_pad != BC):
        out = out[:BC, :, :T]
    return out.reshape(B, C, F, T)


def _reference(x, gamma, beta):
    # Mirrors torch: transpose(2,3) -> LayerNorm(n_feats) -> transpose back.
    xt = jnp.transpose(x, (0, 1, 3, 2)).astype(jnp.float32)
    mean = jnp.mean(xt, axis=-1, keepdims=True)
    var = jnp.mean((xt - mean) ** 2, axis=-1, keepdims=True)
    y = (xt - mean) / jnp.sqrt(var + EPS) * gamma + beta
    return jnp.transpose(y, (0, 1, 3, 2)).astype(x.dtype)


if __name__ == "__main__":
    key = jax.random.PRNGKey(0)
    kx, kg, kb, kx2 = jax.random.split(key, 4)

    # Case 1: small shape consistent with the module (batch, channel, n_feats, time)
    B, C, F, T = 2, 4, 16, 16
    x = jax.random.normal(kx, (B, C, F, T), dtype=jnp.float32)
    gamma = 1.0 + 0.1 * jax.random.normal(kg, (F,), dtype=jnp.float32)
    beta = 0.1 * jax.random.normal(kb, (F,), dtype=jnp.float32)

    y = jax.block_until_ready(cnn_layer_norm(x, gamma, beta))
    y_ref = _reference(x, gamma, beta)
    assert y.shape == (B, C, F, T)
    assert jnp.allclose(y, y_ref, atol=1e-5, rtol=1e-5)

    # Case 2: ragged dims (BC and T not tile multiples) exercise the padding path.
    B2, C2, T2 = 2, 3, 200
    x2 = jax.random.normal(kx2, (B2, C2, F, T2), dtype=jnp.float32)
    y2 = jax.block_until_ready(cnn_layer_norm(x2, gamma, beta))
    y2_ref = _reference(x2, gamma, beta)
    assert y2.shape == (B2, C2, F, T2)
    assert jnp.allclose(y2, y2_ref, atol=1e-5, rtol=1e-5)

    print("KERNEL_OK")
</pallas_src>

<mosaic_0001>
module attributes {stable_mosaic.version = 11 : i64} {
  func.func @_cnn_layernorm_kernel(%arg0: i32, %arg1: i32, %arg2: memref<8x16x128xf32, #tpu.memory_space<vmem>>, %arg3: memref<1x16x1xf32, #tpu.memory_space<vmem>>, %arg4: memref<1x16x1xf32, #tpu.memory_space<vmem>>, %arg5: memref<8x16x128xf32, #tpu.memory_space<vmem>>) attributes {dimension_semantics = [#tpu.dimension_semantics<parallel>, #tpu.dimension_semantics<parallel>], iteration_bounds = array<i64: 1, 1>, scalar_prefetch = 0 : i64, scratch_operands = 0 : i64, tpu.core_type = #tpu.core_type<tc>, window_params = [{transform_indices = @transform_0, window_bounds = array<i64: 8, 16, 128>}, {pipeline_mode = #tpu.pipeline_mode<synchronous>, transform_indices = @transform_1, window_bounds = array<i64: 1, 16, 1>}, {pipeline_mode = #tpu.pipeline_mode<synchronous>, transform_indices = @transform_2, window_bounds = array<i64: 1, 16, 1>}, {transform_indices = @transform_3, window_bounds = array<i64: 8, 16, 128>}]} {
    %c0 = arith.constant 0 : index
    %c0_0 = arith.constant 0 : index
    %c0_1 = arith.constant 0 : index
    %0 = vector.load %arg2[%c0, %c0_0, %c0_1] : memref<8x16x128xf32, #tpu.memory_space<vmem>>, vector<8x16x128xf32>
    %cst = arith.constant dense<0.000000e+00> : vector<8x128xf32>
    %1 = vector.multi_reduction <add>, %0, %cst [1] : vector<8x16x128xf32> to vector<8x128xf32>
    %2 = vector.shape_cast %1 : vector<8x128xf32> to vector<8x1x128xf32>
    %cst_2 = arith.constant 1.600000e+01 : f32
    %3 = vector.broadcast %cst_2 : f32 to vector<8x1x128xf32>
    %4 = arith.divf %2, %3 : vector<8x1x128xf32>
    %5 = vector.broadcast %4 : vector<8x1x128xf32> to vector<8x16x128xf32>
    %6 = arith.subf %0, %5 : vector<8x16x128xf32>
    %7 = arith.mulf %6, %6 : vector<8x16x128xf32>
    %cst_3 = arith.constant dense<0.000000e+00> : vector<8x128xf32>
    %8 = vector.multi_reduction <add>, %7, %cst_3 [1] : vector<8x16x128xf32> to vector<8x128xf32>
    %9 = vector.shape_cast %8 : vector<8x128xf32> to vector<8x1x128xf32>
    %cst_4 = arith.constant 1.600000e+01 : f32
    %10 = vector.broadcast %cst_4 : f32 to vector<8x1x128xf32>
    %11 = arith.divf %9, %10 : vector<8x1x128xf32>
    %cst_5 = arith.constant 9.99999974E-6 : f32
    %12 = vector.broadcast %cst_5 : f32 to vector<8x1x128xf32>
    %13 = arith.addf %11, %12 : vector<8x1x128xf32>
    %14 = math.rsqrt %13 : vector<8x1x128xf32>
    %c0_6 = arith.constant 0 : index
    %c0_7 = arith.constant 0 : index
    %c0_8 = arith.constant 0 : index
    %15 = vector.load %arg3[%c0_6, %c0_7, %c0_8] : memref<1x16x1xf32, #tpu.memory_space<vmem>>, vector<1x16x1xf32>
    %c0_9 = arith.constant 0 : index
    %c0_10 = arith.constant 0 : index
    %c0_11 = arith.constant 0 : index
    %16 = vector.load %arg4[%c0_9, %c0_10, %c0_11] : memref<1x16x1xf32, #tpu.memory_space<vmem>>, vector<1x16x1xf32>
    %17 = vector.broadcast %14 : vector<8x1x128xf32> to vector<8x16x128xf32>
    %18 = arith.mulf %6, %17 : vector<8x16x128xf32>
    %19 = vector.broadcast %15 : vector<1x16x1xf32> to vector<8x16x128xf32>
    %20 = arith.mulf %18, %19 : vector<8x16x128xf32>
    %21 = vector.broadcast %16 : vector<1x16x1xf32> to vector<8x16x128xf32>
    %22 = arith.addf %20, %21 : vector<8x16x128xf32>
    %c0_12 = arith.constant 0 : index
    %c0_13 = arith.constant 0 : index
    %c0_14 = arith.constant 0 : index
    %23 = vector.load %arg5[%c0_12, %c0_13, %c0_14] : memref<8x16x128xf32, #tpu.memory_space<vmem>>, vector<8x16x128xf32>
    tpu.vector_store %arg5[%c0_12, %c0_13, %c0_14], %22 {strides = array<i32>} : memref<8x16x128xf32, #tpu.memory_space<vmem>>, vector<8x16x128xf32>,
    return
  }
  func.func @transform_0(%arg0: i32, %arg1: i32) -> (i32, i32, i32) {
    %c0_i32 = arith.constant 0 : i32
    %c0_i32_0 = arith.constant 0 : i32
    return %arg0, %c0_i32, %arg1 : i32, i32, i32
  }
  func.func @transform_1(%arg0: i32, %arg1: i32) -> (i32, i32, i32) {
    %c0_i32 = arith.constant 0 : i32
    %c0_i32_0 = arith.constant 0 : i32
    %c0_i32_1 = arith.constant 0 : i32
    %c0_i32_2 = arith.constant 0 : i32
    return %c0_i32, %c0_i32_0, %c0_i32_1 : i32, i32, i32
  }
  func.func @transform_2(%arg0: i32, %arg1: i32) -> (i32, i32, i32) {
    %c0_i32 = arith.constant 0 : i32
    %c0_i32_0 = arith.constant 0 : i32
    %c0_i32_1 = arith.constant 0 : i32
    %c0_i32_2 = arith.constant 0 : i32
    return %c0_i32, %c0_i32_0, %c0_i32_1 : i32, i32, i32
  }
  func.func @transform_3(%arg0: i32, %arg1: i32) -> (i32, i32, i32) {
    %c0_i32 = arith.constant 0 : i32
    %c0_i32_0 = arith.constant 0 : i32
    return %arg0, %c0_i32, %arg1 : i32, i32, i32
  }
}

</mosaic_0001>

<llo_original>
// kernel: tpu_custom_call.1
$region0: #{tpu_custom_call.1}
  #allocation0 [shape = 'u32[]', space=smem, size = 0x4, offset = 0x4, fixed_abs, tag = 'smem constant byte address 0x4 - core index']
  #allocation1 [shape = 'u32[144,128]{1,0:T(1,128)}', space=vmem, size = 0x12000, scoped, tag = 'internal scratch']
  %s0 = inlined_call_operand.hbm [shape: f32[8,16,128], index: 0, kind: input, shape index: {}]
  %s1 = inlined_call_operand.vmem [shape: f32[1,16,1], index: 1, kind: input, shape index: {}]
  %s2 = inlined_call_operand.vmem [shape: f32[1,16,1], index: 2, kind: input, shape index: {}]
  %s3 = inlined_call_operand.hbm [shape: f32[8,16,128], index: 3, kind: output, shape index: {}]
  %s4 = sld [smem:[#allocation0]]
  $region26: #{tpu_custom_call.1} parent=0
    _
  %s6 = ssub.s32 1, %s4
  %s7 = scalar_select 0, %s6, %s4
  $region1: #{tpu_custom_call.1} parent=0
    #allocation2 [shape = 'u8[65536]{0}', space=vmem, size = 0x10000, scoped, tag = 'input window, operand 0, single buffered']
    #allocation3 [shape = 's32[1]{0}', space=sflag, size = 0x4, scoped, tag = 'scoped memory for tpu_custom_call.1']
    #allocation4 [shape = 's32[1]{0}', space=sflag, size = 0x4, scoped, tag = 'scoped memory for tpu_custom_call.1']
    #allocation5 [shape = 'u8[65536]{0}', space=vmem, size = 0x10000, scoped, tag = 'output window, operand 0, single buffered']
    %8 = vsyncpa [#allocation3], 0
    %9 = vsyncpa [#allocation4], 0
    // Predicated region
    $region2: #{tpu_custom_call.1} parent=1 // pred_check
      _
    $region3: #{tpu_custom_call.1} parent=1 // pred_check_branch
      %11 = sbr.rel (0) target = $region5
    $region4: #{tpu_custom_call.1} parent=1 // pred_region
      %s13 = ssub.s32 2048, 2048
      %14 = vsyncadd [#allocation3], %s13
      %s15 = sshll.u32 [#allocation2], 4
      %s16 = int_to_ptr.vmem [resolvable:$true] %s15
      %21 = dma.hbm_to_vmem [thread:$0]  %s0, 2048, %s16, [#allocation3], 128, 128, 8
    $region5: #{tpu_custom_call.1} parent=1 // pred_fallthru
      _
    // Predicated region
    $region6: #{tpu_custom_call.1} parent=1 // pred_check
      _
    $region7: #{tpu_custom_call.1} parent=1 // pred_check_branch
      %23 = sbr.rel (0) target = $region9
    $region8: #{tpu_custom_call.1} parent=1 // pred_region
      _
    $region9: #{tpu_custom_call.1} parent=1 // pred_fallthru
      _
    // Predicated region
    $region10: #{tpu_custom_call.1} parent=1 // pred_check
      _
    $region11: #{tpu_custom_call.1} parent=1 // pred_check_branch
      %25 = sbr.rel (0) target = $region13
    $region12: #{tpu_custom_call.1} parent=1 // pred_region
      _
    $region13: #{tpu_custom_call.1} parent=1 // pred_fallthru
      _
    // Predicated region
    $region14: #{tpu_custom_call.1} parent=1 // pred_check
      _
    $region15: #{tpu_custom_call.1} parent=1 // pred_check_branch
      %27 = sbr.rel (0) target = $region17
    $region16: #{tpu_custom_call.1} parent=1 // pred_region
      %28 = dma.done [#allocation3], 2048
    $region17: #{tpu_custom_call.1} parent=1 // pred_fallthru
      _
    %v29 = vld [vmem:[#allocation2] sm:$0xff]
    %v30 = vld [vmem:[#allocation2 + $0x8] sm:$0xff]
    %v31 = vld [vmem:[#allocation2 + $0x10] sm:$0xff]
    %v32 = vld [vmem:[#allocation2 + $0x18] sm:$0xff]
    %v33 = vld [vmem:[#allocation2 + $0x20] sm:$0xff]
    %v34 = vld [vmem:[#allocation2 + $0x28] sm:$0xff]
    %v35 = vld [vmem:[#allocation2 + $0x30] sm:$0xff]
    %v36 = vld [vmem:[#allocation2 + $0x38] sm:$0xff]
    %v37 = vld [vmem:[#allocation2 + $0x40] sm:$0xff]
    %v38 = vld [vmem:[#allocation2 + $0x48] sm:$0xff]
    %v39 = vld [vmem:[#allocation2 + $0x50] sm:$0xff]
    %v40 = vld [vmem:[#allocation2 + $0x58] sm:$0xff]
    %v41 = vld [vmem:[#allocation2 + $0x60] sm:$0xff]
    %v42 = vld [vmem:[#allocation2 + $0x68] sm:$0xff]
    %v43 = vld [vmem:[#allocation2 + $0x70] sm:$0xff]
    %v44 = vld [vmem:[#allocation2 + $0x78] sm:$0xff]
    %v45 = vadd.f32 %v29, %v30
    %v46 = vrot.slane %v45, 4
    %v47 = vadd.f32 %v45, %v46
    %v48 = vrot.slane %v47, 2
    %v49 = vadd.f32 %v47, %v48
    %v50 = vrot.slane %v49, 1
    %v51 = vadd.f32 %v49, %v50
    %v52 = vadd.f32 %v31, %v32
    %v53 = vrot.slane %v52, 4
    %v54 = vadd.f32 %v52, %v53
    %v55 = vrot.slane %v54, 2
    %v56 = vadd.f32 %v54, %v55
    %v57 = vrot.slane %v56, 1
    %v58 = vadd.f32 %v56, %v57
    %v59 = vadd.f32 %v33, %v34
    %v60 = vrot.slane %v59, 4
    %v61 = vadd.f32 %v59, %v60
    %v62 = vrot.slane %v61, 2
    %v63 = vadd.f32 %v61, %v62
    %v64 = vrot.slane %v63, 1
    %v65 = vadd.f32 %v63, %v64
    %v66 = vadd.f32 %v35, %v36
    %v67 = vrot.slane %v66, 4
    %v68 = vadd.f32 %v66, %v67
    %v69 = vrot.slane %v68, 2
    %v70 = vadd.f32 %v68, %v69
    %v71 = vrot.slane %v70, 1
    %v72 = vadd.f32 %v70, %v71
    %v73 = vadd.f32 %v37, %v38
    %v74 = vrot.slane %v73, 4
    %v75 = vadd.f32 %v73, %v74
    %v76 = vrot.slane %v75, 2
    %v77 = vadd.f32 %v75, %v76
    %v78 = vrot.slane %v77, 1
    %v79 = vadd.f32 %v77, %v78
    %v80 = vadd.f32 %v39, %v40
    %v81 = vrot.slane %v80, 4
    %v82 = vadd.f32 %v80, %v81
    %v83 = vrot.slane %v82, 2
    %v84 = vadd.f32 %v82, %v83
    %v85 = vrot.slane %v84, 1
    %v86 = vadd.f32 %v84, %v85
    %v87 = vadd.f32 %v41, %v42
    %v88 = vrot.slane %v87, 4
    %v89 = vadd.f32 %v87, %v88
    %v90 = vrot.slane %v89, 2
    %v91 = vadd.f32 %v89, %v90
    %v92 = vrot.slane %v91, 1
    %v93 = vadd.f32 %v91, %v92
    %v94 = vadd.f32 %v43, %v44
    %v95 = vrot.slane %v94, 4
    %v96 = vadd.f32 %v94, %v95
    %v97 = vrot.slane %v96, 2
    %v98 = vadd.f32 %v96, %v97
    %v99 = vrot.slane %v98, 1
    %v100 = vadd.f32 %v98, %v99
    %v101 = vrcp.pop 16.0
    %v102 = vmul.f32 %v51, %v101
    %v103 = vmul.f32 %v58, %v101
    %v104 = vmul.f32 %v65, %v101
    %v105 = vmul.f32 %v72, %v101
    %v106 = vmul.f32 %v79, %v101
    %v107 = vmul.f32 %v86, %v101
    %v108 = vmul.f32 %v93, %v101
    %v109 = vmul.f32 %v100, %v101
    %v110 = vsub.f32 %v29, %v102
    %v111 = vsub.f32 %v30, %v102
    %v112 = vsub.f32 %v31, %v103
    %v113 = vsub.f32 %v32, %v103
    %v114 = vsub.f32 %v33, %v104
    %v115 = vsub.f32 %v34, %v104
    %v116 = vsub.f32 %v35, %v105
    %v117 = vsub.f32 %v36, %v105
    %v118 = vsub.f32 %v37, %v106
    %v119 = vsub.f32 %v38, %v106
    %v120 = vsub.f32 %v39, %v107
    %v121 = vsub.f32 %v40, %v107
    %v122 = vsub.f32 %v41, %v108
    %v123 = vsub.f32 %v42, %v108
    %v124 = vsub.f32 %v43, %v109
    %v125 = vsub.f32 %v44, %v109
    %v126 = vmul.f32 %v110, %v110
    %v127 = vmul.f32 %v111, %v111
    %v128 = vmul.f32 %v112, %v112
    %v129 = vmul.f32 %v113, %v113
    %v130 = vmul.f32 %v114, %v114
    %v131 = vmul.f32 %v115, %v115
    %v132 = vmul.f32 %v116, %v116
    %v133 = vmul.f32 %v117, %v117
    %v134 = vmul.f32 %v118, %v118
    %v135 = vmul.f32 %v119, %v119
    %v136 = vmul.f32 %v120, %v120
    %v137 = vmul.f32 %v121, %v121
    %v138 = vmul.f32 %v122, %v122
    %v139 = vmul.f32 %v123, %v123
    %v140 = vmul.f32 %v124, %v124
    %v141 = vmul.f32 %v125, %v125
    %v142 = vadd.f32 %v126, %v127
    %v143 = vrot.slane %v142, 4
    %v144 = vadd.f32 %v142, %v143
    %v145 = vrot.slane %v144, 2
    %v146 = vadd.f32 %v144, %v145
    %v147 = vrot.slane %v146, 1
    %v148 = vadd.f32 %v146, %v147
    %v149 = vadd.f32 %v128, %v129
    %v150 = vrot.slane %v149, 4
    %v151 = vadd.f32 %v149, %v150
    %v152 = vrot.slane %v151, 2
    %v153 = vadd.f32 %v151, %v152
    %v154 = vrot.slane %v153, 1
    %v155 = vadd.f32 %v153, %v154
    %v156 = vadd.f32 %v130, %v131
    %v157 = vrot.slane %v156, 4
    %v158 = vadd.f32 %v156, %v157
    %v159 = vrot.slane %v158, 2
    %v160 = vadd.f32 %v158, %v159
    %v161 = vrot.slane %v160, 1
    %v162 = vadd.f32 %v160, %v161
    %v163 = vadd.f32 %v132, %v133
    %v164 = vrot.slane %v163, 4
    %v165 = vadd.f32 %v163, %v164
    %v166 = vrot.slane %v165, 2
    %v167 = vadd.f32 %v165, %v166
    %v168 = vrot.slane %v167, 1
    %v169 = vadd.f32 %v167, %v168
    %v170 = vadd.f32 %v134, %v135
    %v171 = vrot.slane %v170, 4
    %v172 = vadd.f32 %v170, %v171
    %v173 = vrot.slane %v172, 2
    %v174 = vadd.f32 %v172, %v173
    %v175 = vrot.slane %v174, 1
    %v176 = vadd.f32 %v174, %v175
    %v177 = vadd.f32 %v136, %v137
    %v178 = vrot.slane %v177, 4
    %v179 = vadd.f32 %v177, %v178
    %v180 = vrot.slane %v179, 2
    %v181 = vadd.f32 %v179, %v180
    %v182 = vrot.slane %v181, 1
    %v183 = vadd.f32 %v181, %v182
    %v184 = vadd.f32 %v138, %v139
    %v185 = vrot.slane %v184, 4
    %v186 = vadd.f32 %v184, %v185
    %v187 = vrot.slane %v186, 2
    %v188 = vadd.f32 %v186, %v187
    %v189 = vrot.slane %v188, 1
    %v190 = vadd.f32 %v188, %v189
    %v191 = vadd.f32 %v140, %v141
    %v192 = vrot.slane %v191, 4
    %v193 = vadd.f32 %v191, %v192
    %v194 = vrot.slane %v193, 2
    %v195 = vadd.f32 %v193, %v194
    %v196 = vrot.slane %v195, 1
    %v197 = vadd.f32 %v195, %v196
    %v198 = vmul.f32 %v148, %v101
    %v199 = vmul.f32 %v155, %v101
    %v200 = vmul.f32 %v162, %v101
    %v201 = vmul.f32 %v169, %v101
    %v202 = vmul.f32 %v176, %v101
    %v203 = vmul.f32 %v183, %v101
    %v204 = vmul.f32 %v190, %v101
    %v205 = vmul.f32 %v197, %v101
    %v206 = vadd.f32 %v198, 1e-05
    %v207 = vadd.f32 %v199, 1e-05
    %v208 = vadd.f32 %v200, 1e-05
    %v209 = vadd.f32 %v201, 1e-05
    %v210 = vadd.f32 %v202, 1e-05
    %v211 = vadd.f32 %v203, 1e-05
    %v212 = vadd.f32 %v204, 1e-05
    %v213 = vadd.f32 %v205, 1e-05
    %v214 = vrsqrt.pop %v206
    %v215 = vrsqrt.pop %v207
    %v216 = vrsqrt.pop %v208
    %v217 = vrsqrt.pop %v209
    %v218 = vrsqrt.pop %v210
    %v219 = vrsqrt.pop %v211
    %v220 = vrsqrt.pop %v212
    %v221 = vrsqrt.pop %v213
    %v222 = vld [vmem:[%s1] sm:$0xff]
    %v223 = vld [vmem:[%s1 + $0x8] sm:$0xff]
    %v224 = vld [vmem:[%s2] sm:$0xff]
    %v225 = vld [vmem:[%s2 + $0x8] sm:$0xff]
    %v226 = vmul.f32 %v110, %v214
    %v227 = vmul.f32 %v111, %v214
    %v228 = vmul.f32 %v112, %v215
    %v229 = vmul.f32 %v113, %v215
    %v230 = vmul.f32 %v114, %v216
    %v231 = vmul.f32 %v115, %v216
    %v232 = vmul.f32 %v116, %v217
    %v233 = vmul.f32 %v117, %v217
    %v234 = vmul.f32 %v118, %v218
    %v235 = vmul.f32 %v119, %v218
    %v236 = vmul.f32 %v120, %v219
    %v237 = vmul.f32 %v121, %v219
    %v238 = vmul.f32 %v122, %v220
    %v239 = vmul.f32 %v123, %v220
    %v240 = vmul.f32 %v124, %v221
    %v241 = vmul.f32 %v125, %v221
    %243 = vset.pattern.permute.xlu0 0
    %244 = vperm.xlu0 %243, %v222
    %v245 = vpop.permute.xlu0 %244
    %248 = vset.pattern.permute.xlu0 0
    %249 = vperm.xlu0 %248, %v223
    %v250 = vpop.permute.xlu0 %249
    %v252 = vmul.f32 %v226, %v245
    %v253 = vmul.f32 %v227, %v250
    %v254 = vmul.f32 %v228, %v245
    %v255 = vmul.f32 %v229, %v250
    %v256 = vmul.f32 %v230, %v245
    %v257 = vmul.f32 %v231, %v250
    %v258 = vmul.f32 %v232, %v245
    %v259 = vmul.f32 %v233, %v250
    %v260 = vmul.f32 %v234, %v245
    %v261 = vmul.f32 %v235, %v250
    %v262 = vmul.f32 %v236, %v245
    %v263 = vmul.f32 %v237, %v250
    %v264 = vmul.f32 %v238, %v245
    %v265 = vmul.f32 %v239, %v250
    %v266 = vmul.f32 %v240, %v245
    %v267 = vmul.f32 %v241, %v250
    %269 = vset.pattern.permute.xlu0 0
    %270 = vperm.xlu0 %269, %v224
    %v271 = vpop.permute.xlu0 %270
    %274 = vset.pattern.permute.xlu0 0
    %275 = vperm.xlu0 %274, %v225
    %v276 = vpop.permute.xlu0 %275
    %v278 = vadd.f32 %v252, %v271
    %v279 = vadd.f32 %v253, %v276
    %v280 = vadd.f32 %v254, %v271
    %v281 = vadd.f32 %v255, %v276
    %v282 = vadd.f32 %v256, %v271
    %v283 = vadd.f32 %v257, %v276
    %v284 = vadd.f32 %v258, %v271
    %v285 = vadd.f32 %v259, %v276
    %v286 = vadd.f32 %v260, %v271
    %v287 = vadd.f32 %v261, %v276
    %v288 = vadd.f32 %v262, %v271
    %v289 = vadd.f32 %v263, %v276
    %v290 = vadd.f32 %v264, %v271
    %v291 = vadd.f32 %v265, %v276
    %v292 = vadd.f32 %v266, %v271
    %v293 = vadd.f32 %v267, %v276
    %294 = vst [vmem:[#allocation5] sm:$0xff] %v278
    %295 = vst [vmem:[#allocation5 + $0x8] sm:$0xff] %v279
    %296 = vst [vmem:[#allocation5 + $0x10] sm:$0xff] %v280
    %297 = vst [vmem:[#allocation5 + $0x18] sm:$0xff] %v281
    %298 = vst [vmem:[#allocation5 + $0x20] sm:$0xff] %v282
    %299 = vst [vmem:[#allocation5 + $0x28] sm:$0xff] %v283
    %300 = vst [vmem:[#allocation5 + $0x30] sm:$0xff] %v284
    %301 = vst [vmem:[#allocation5 + $0x38] sm:$0xff] %v285
    %302 = vst [vmem:[#allocation5 + $0x40] sm:$0xff] %v286
    %303 = vst [vmem:[#allocation5 + $0x48] sm:$0xff] %v287
    %304 = vst [vmem:[#allocation5 + $0x50] sm:$0xff] %v288
    %305 = vst [vmem:[#allocation5 + $0x58] sm:$0xff] %v289
    %306 = vst [vmem:[#allocation5 + $0x60] sm:$0xff] %v290
    %307 = vst [vmem:[#allocation5 + $0x68] sm:$0xff] %v291
    %308 = vst [vmem:[#allocation5 + $0x70] sm:$0xff] %v292
    %309 = vst [vmem:[#allocation5 + $0x78] sm:$0xff] %v293
    // Predicated region
    $region18: #{tpu_custom_call.1} parent=1 // pred_check
      _
    $region19: #{tpu_custom_call.1} parent=1 // pred_check_branch
      %311 = sbr.rel (0) target = $region21
    $region20: #{tpu_custom_call.1} parent=1 // pred_region
      %s313 = ssub.s32 2048, 2048
      %314 = vsyncadd [#allocation4], %s313
      %s315 = sshll.u32 [#allocation5], 4
      %s316 = int_to_ptr.vmem [resolvable:$true] %s315
      %321 = dma.vmem_to_hbm [thread:$0]  %s316, 2048, %s3, [#allocation4], 128, 128, 8
    $region21: #{tpu_custom_call.1} parent=1 // pred_fallthru
      _
    // Predicated region
    $region22: #{tpu_custom_call.1} parent=1 // pred_check
      _
    $region23: #{tpu_custom_call.1} parent=1 // pred_check_branch
      %323 = sbr.rel (0) target = $region25
    $region24: #{tpu_custom_call.1} parent=1 // pred_region
      %324 = dma.done [#allocation4], 2048
    $region25: #{tpu_custom_call.1} parent=1 // pred_fallthru
      _
    %325 = vsyncpa [#allocation3], 1
    %326 = vsyncpa [#allocation4], 1

</llo_original>
